<compile_context>
chip_gen: v7x
topology: tpu7x:2x2x1
jax: 0.10.0
libtpu: 0.0.40
codegen_flags: <defaults>
</compile_context>

<pallas_src>
import math
from functools import partial

import jax
import jax.numpy as jnp
from jax.experimental import pallas as pl
from jax.experimental.pallas import tpu as pltpu


# ----------------------------------------------------------------------------
# Fused kernel: strided conv (single big-K bf16 matmul) + bias + LayerNorm
# ----------------------------------------------------------------------------
def _patch_embed_ln_kernel(xm_ref, xh_ref, w_ref, b_ref, g_ref, beta_ref, o_ref,
                           *, tho, wo, eps):
    # xm_ref:   (1, tho, Ws, Cs)   main space-to-depth rows (bf16)
    # xh_ref:   (1, 1,   Ws, Cs)   one-row halo below the tile (bf16)
    # w_ref:    (4*Cs, Cout)       rearranged conv weight (bf16)
    # b_ref:    (1, Cout)          conv bias (f32)
    # g_ref:    (1, Cout)          LayerNorm weight (f32)
    # beta_ref: (1, Cout)          LayerNorm bias   (f32)
    # o_ref:    (1, tho*wo, Cout)  output tile, lane-dense on Cout
    ws = xm_ref.shape[2]
    cs = xm_ref.shape[3]
    cout = o_ref.shape[2]
    hw = tho * wo

    # Stay in bf16 for all patch assembly (pure data movement, lossless).
    xm = xm_ref[...].reshape(tho, ws, cs)
    xh = xh_ref[...].reshape(1, ws, cs)
    xfull = jnp.concatenate([xm, xh], axis=0)               # (tho+1, Ws, Cs)

    # 2x2 window over the s2d tile -> im2col patch matrix, entirely in VMEM.
    taps = [xfull[dh:dh + tho, dw:dw + wo, :]                # 4 x (tho, wo, Cs)
            for dh in range(2) for dw in range(2)]
    patches = jnp.concatenate(taps, axis=-1).reshape(hw, 4 * cs)   # bf16

    # One MXU matmul, K = 4*Cs (256 for Cin padded to 4): f32 accumulation.
    y = jnp.dot(patches, w_ref[...], preferred_element_type=jnp.float32)
    y = y + b_ref[...]                                       # (hw, Cout) f32

    # Fused LayerNorm over the channel (lane) dimension.
    mu = jnp.mean(y, axis=-1, keepdims=True)
    d = y - mu
    var = jnp.mean(d * d, axis=-1, keepdims=True)
    yn = d * jax.lax.rsqrt(var + eps)
    out = yn * g_ref[...] + beta_ref[...]
    o_ref[...] = out.astype(o_ref.dtype).reshape(1, hw, cout)


# ----------------------------------------------------------------------------
# Row-tile selection: divisor of Ho, unmasked stores, ~2048 matmul rows/step,
# and (if possible) >= 2 parallel grid steps so v7x's 2nd TensorCore has work.
# ----------------------------------------------------------------------------
def _choose_row_tile(ho, wo, batch, target_rows=2048):
    best_t, best_score = ho, None
    for t in range(1, ho + 1):
        if ho % t:
            continue
        n_r = ho // t
        if n_r > 1 and (t * wo) % 8 != 0:
            continue                       # ragged output block -> masked vst
        score = abs(t * wo - target_rows)
        if batch * n_r < 2:
            score += 1 << 40               # prefer some grid parallelism
        if best_score is None or score < best_score:
            best_t, best_score = t, score
    return best_t


# ----------------------------------------------------------------------------
# Wrapper: layout glue (bf16 cast / pad / space-to-depth / weight re-pack)
# ----------------------------------------------------------------------------
def overlap_patch_embed(x_nchw, params, *, patch_size=7, stride=4, eps=1e-5,
                        out_dtype=None, channels_last=False, row_tile=None):
    w_hwio = params["proj_w"]            # (K, K, Cin, Cout)
    bias = params["proj_b"]              # (Cout,)
    gamma = params["ln_w"]               # (Cout,)
    beta = params["ln_b"]                # (Cout,)

    B, Cin, H, W = x_nchw.shape
    K, S = patch_size, stride
    pad = K // 2
    Cout = w_hwio.shape[-1]
    assert K <= 2 * S, "2x2 space-to-depth window must cover the kernel"
    if out_dtype is None:
        out_dtype = x_nchw.dtype

    Ho = (H + 2 * pad - K) // S + 1
    Wo = (W + 2 * pad - K) // S + 1
    assert Ho >= 1 and Wo >= 1

    # Pad Cin up to a multiple of 4 so Cs = S*S*Cin_p is lane friendly (64 for
    # Cin=3, S=4) and K = 4*Cs = 256 fills the MXU depth.  Extra channels are 0.
    cin_p = -(-Cin // 4) * 4
    Cs = S * S * cin_p
    Kdim = 4 * Cs

    # Pad spatial extents to S*(Ho+1) / S*(Wo+1): the 2x2 s2d window then spans
    # a (2S)x(2S) field; taps beyond KxK get zero weights.
    Hp, Wp = S * (Ho + 1), S * (Wo + 1)
    assert Hp >= H + pad and Wp >= W + pad

    # bf16 first: transpose / pad / space-to-depth all run at half HBM traffic.
    x = jnp.transpose(x_nchw.astype(jnp.bfloat16), (0, 2, 3, 1))     # NHWC bf16
    xp = jnp.pad(x, ((0, 0), (pad, Hp - H - pad), (pad, Wp - W - pad),
                     (0, cin_p - Cin)))

    # Space-to-depth (block = S): pure layout transform, no duplication.
    Hs, Ws = Hp // S, Wp // S                                        # Ho+1, Wo+1
    xs = xp.reshape(B, Hs, S, Ws, S, cin_p)
    xs = jnp.transpose(xs, (0, 1, 3, 2, 4, 5)).reshape(B, Hs, Ws, Cs)

    # Row tiling: main rows (non-overlapping) + one halo row per tile.
    tho = row_tile if row_tile is not None else _choose_row_tile(Ho, Wo, B)
    assert Ho % tho == 0, f"row_tile {tho} must divide Ho {Ho}"
    nR = Ho // tho
    if nR > 1:
        assert (tho * Wo) % 8 == 0, "row tile would force masked output stores"
    xs_main = xs[:, :nR * tho].reshape(B * nR, tho, Ws, Cs)
    xs_halo = xs[:, tho::tho].reshape(B * nR, 1, Ws, Cs)

    # Re-pack the KxK conv weight into the (tap(dh,dw), i, j, ci) order used by
    # the in-kernel concat; zero rows cover the padded (2S)x(2S) positions.
    w8 = jnp.pad(w_hwio, ((0, 2 * S - K), (0, 2 * S - K),
                          (0, cin_p - Cin), (0, 0)))
    wbig = w8.reshape(2, S, 2, S, cin_p, Cout)
    wbig = jnp.transpose(wbig, (0, 2, 1, 3, 4, 5)).reshape(Kdim, Cout)
    wbig = wbig.astype(jnp.bfloat16)

    b2 = bias.reshape(1, Cout).astype(jnp.float32)
    g2 = gamma.reshape(1, Cout).astype(jnp.float32)
    be2 = beta.reshape(1, Cout).astype(jnp.float32)

    # Explicit VMEM budget (double-buffered inputs + outputs + kernel temps).
    out_isz = jnp.dtype(out_dtype).itemsize
    blk_in = (tho + 1) * Ws * Cs * 2
    blk_w = Kdim * Cout * 2
    blk_out = tho * Wo * Cout * out_isz
    blk_tmp = tho * Wo * (Kdim * 2 + 4 * Cout * 4)   # bf16 patches + f32 temps
    vmem_need = 2 * (blk_in + blk_w + 3 * Cout * 4) + 2 * blk_out + blk_tmp
    vmem_limit = int(min(64 * 2**20, max(2 * vmem_need, 32 * 2**20)))

    cost = pl.CostEstimate(
        flops=2 * B * Ho * Wo * Kdim * Cout,
        transcendentals=B * Ho * Wo,
        bytes_accessed=int(xs_main.size * 2 + xs_halo.size * 2 + wbig.size * 2
                           + B * Ho * Wo * Cout * out_isz + 3 * Cout * 4),
    )

    kernel = partial(_patch_embed_ln_kernel, tho=tho, wo=Wo, eps=eps)
    out = pl.pallas_call(
        kernel,
        out_shape=jax.ShapeDtypeStruct((B, Ho * Wo, Cout), out_dtype),
        grid=(B, nR),
        in_specs=[
            pl.BlockSpec((1, tho, Ws, Cs), lambda b, r: (b * nR + r, 0, 0, 0)),
            pl.BlockSpec((1, 1, Ws, Cs), lambda b, r: (b * nR + r, 0, 0, 0)),
            pl.BlockSpec((Kdim, Cout), lambda b, r: (0, 0)),
            pl.BlockSpec((1, Cout), lambda b, r: (0, 0)),
            pl.BlockSpec((1, Cout), lambda b, r: (0, 0)),
            pl.BlockSpec((1, Cout), lambda b, r: (0, 0)),
        ],
        out_specs=pl.BlockSpec((1, tho * Wo, Cout), lambda b, r: (b, r, 0)),
        compiler_params=pltpu.CompilerParams(
            dimension_semantics=("parallel", "parallel"),
            vmem_limit_bytes=vmem_limit),
        cost_estimate=cost,
    )(xs_main, xs_halo, wbig, b2, g2, be2)                 # (B, Ho*Wo, Cout)

    out = out.reshape(B, Ho, Wo, Cout)
    if channels_last:
        return out                                          # (B, Ho, Wo, Cout)
    return jnp.transpose(out, (0, 3, 1, 2))                 # NCHW (module layout)


# ----------------------------------------------------------------------------
# Pure-JAX reference (for correctness check) and parameter init
# ----------------------------------------------------------------------------
def overlap_patch_embed_ref(x_nchw, params, *, patch_size=7, stride=4, eps=1e-5):
    pad = patch_size // 2
    x = jnp.transpose(x_nchw, (0, 2, 3, 1))
    y = jax.lax.conv_general_dilated(
        x, params["proj_w"], window_strides=(stride, stride),
        padding=((pad, pad), (pad, pad)),
        dimension_numbers=("NHWC", "HWIO", "NHWC")) + params["proj_b"]
    mu = jnp.mean(y, axis=-1, keepdims=True)
    var = jnp.mean((y - mu) ** 2, axis=-1, keepdims=True)
    yn = (y - mu) * jax.lax.rsqrt(var + eps)
    yn = yn * params["ln_w"] + params["ln_b"]
    return jnp.transpose(yn, (0, 3, 1, 2))


def init_params(key, patch_size=7, in_chans=3, embed_dim=128):
    # Conv2d: N(0, sqrt(2 / (k*k*out_channels))), bias = 0 (matches _init_weights)
    # LayerNorm: weight = 1, bias = 0
    std = math.sqrt(2.0 / (patch_size * patch_size * embed_dim))
    w = jax.random.normal(
        key, (patch_size, patch_size, in_chans, embed_dim), jnp.float32) * std
    return {
        "proj_w": w,
        "proj_b": jnp.zeros((embed_dim,), jnp.float32),
        "ln_w": jnp.ones((embed_dim,), jnp.float32),
        "ln_b": jnp.zeros((embed_dim,), jnp.float32),
    }


if __name__ == "__main__":
    B, Cin, H, W = 2, 3, 16, 16
    embed_dim = 128                      # lane-dense output channel dim
    key = jax.random.PRNGKey(0)
    kx, kp = jax.random.split(key)
    x = jax.random.normal(kx, (B, Cin, H, W), jnp.float32)
    params = init_params(kp, patch_size=7, in_chans=Cin, embed_dim=embed_dim)

    ref = overlap_patch_embed_ref(x, params)

    # 1) Module-faithful path: f32, NCHW (matches the PyTorch forward exactly).
    out = jax.jit(overlap_patch_embed)(x, params)
    jax.block_until_ready(out)
    assert out.shape == (B, embed_dim, 4, 4), out.shape
    assert out.dtype == jnp.float32
    max_err = float(jnp.max(jnp.abs(out - ref)))
    assert max_err < 5e-2, f"max abs err vs reference (NCHW/f32): {max_err}"

    # 2) Fast path: bf16 output, channels-last, no trailing NCHW transpose
    #    (the layout the downstream encoder should consume).
    fast_fn = jax.jit(partial(overlap_patch_embed,
                              out_dtype=jnp.bfloat16, channels_last=True))
    fast = fast_fn(x, params)
    jax.block_until_ready(fast)
    assert fast.shape == (B, 4, 4, embed_dim), fast.shape
    ref_nhwc = jnp.transpose(ref, (0, 2, 3, 1))
    max_err2 = float(jnp.max(jnp.abs(fast.astype(jnp.float32) - ref_nhwc)))
    assert max_err2 < 1e-1, f"max abs err vs reference (NHWC/bf16): {max_err2}"

    print("KERNEL_OK")
</pallas_src>

<mosaic_0001>
module attributes {stable_mosaic.version = 11 : i64} {
  func.func @_patch_embed_ln_kernel(%arg0: i32, %arg1: i32, %arg2: memref<1x4x5x64xbf16, #tpu.memory_space<vmem>>, %arg3: memref<1x1x5x64xbf16, #tpu.memory_space<vmem>>, %arg4: memref<256x128xbf16, #tpu.memory_space<vmem>>, %arg5: memref<1x128xf32, #tpu.memory_space<vmem>>, %arg6: memref<1x128xf32, #tpu.memory_space<vmem>>, %arg7: memref<1x128xf32, #tpu.memory_space<vmem>>, %arg8: memref<1x16x128xf32, #tpu.memory_space<vmem>>) attributes {dimension_semantics = [#tpu.dimension_semantics<parallel>, #tpu.dimension_semantics<parallel>], iteration_bounds = array<i64: 2, 1>, scalar_prefetch = 0 : i64, scratch_operands = 0 : i64, tpu.core_type = #tpu.core_type<tc>, window_params = [{transform_indices = @transform_0, window_bounds = array<i64: 1, 4, 5, 64>}, {transform_indices = @transform_1, window_bounds = array<i64: 1, 1, 5, 64>}, {pipeline_mode = #tpu.pipeline_mode<synchronous>, transform_indices = @transform_2, window_bounds = array<i64: 256, 128>}, {pipeline_mode = #tpu.pipeline_mode<synchronous>, transform_indices = @transform_3, window_bounds = array<i64: 1, 128>}, {pipeline_mode = #tpu.pipeline_mode<synchronous>, transform_indices = @transform_4, window_bounds = array<i64: 1, 128>}, {pipeline_mode = #tpu.pipeline_mode<synchronous>, transform_indices = @transform_5, window_bounds = array<i64: 1, 128>}, {transform_indices = @transform_6, window_bounds = array<i64: 1, 16, 128>}]} {
    %c0 = arith.constant 0 : index
    %c0_0 = arith.constant 0 : index
    %c0_1 = arith.constant 0 : index
    %c0_2 = arith.constant 0 : index
    %0 = vector.load %arg2[%c0, %c0_0, %c0_1, %c0_2] : memref<1x4x5x64xbf16, #tpu.memory_space<vmem>>, vector<1x4x5x64xbf16>
    %1 = vector.shape_cast %0 : vector<1x4x5x64xbf16> to vector<4x5x64xbf16>
    %c0_3 = arith.constant 0 : index
    %c0_4 = arith.constant 0 : index
    %c0_5 = arith.constant 0 : index
    %c0_6 = arith.constant 0 : index
    %2 = vector.load %arg3[%c0_3, %c0_4, %c0_5, %c0_6] : memref<1x1x5x64xbf16, #tpu.memory_space<vmem>>, vector<1x1x5x64xbf16>
    %3 = vector.shape_cast %2 : vector<1x1x5x64xbf16> to vector<1x5x64xbf16>
    %4 = tpu.concatenate %1, %3 in 0 : vector<4x5x64xbf16>, vector<1x5x64xbf16> -> vector<5x5x64xbf16>
    %5 = vector.extract_strided_slice %4 {offsets = [0, 0, 0], sizes = [4, 4, 64], strides = [1, 1, 1]} : vector<5x5x64xbf16> to vector<4x4x64xbf16>
    %6 = vector.extract_strided_slice %4 {offsets = [0, 1, 0], sizes = [4, 4, 64], strides = [1, 1, 1]} : vector<5x5x64xbf16> to vector<4x4x64xbf16>
    %7 = vector.extract_strided_slice %4 {offsets = [1, 0, 0], sizes = [4, 4, 64], strides = [1, 1, 1]} : vector<5x5x64xbf16> to vector<4x4x64xbf16>
    %8 = vector.extract_strided_slice %4 {offsets = [1, 1, 0], sizes = [4, 4, 64], strides = [1, 1, 1]} : vector<5x5x64xbf16> to vector<4x4x64xbf16>
    %9 = tpu.concatenate %5, %6, %7, %8 in 2 : vector<4x4x64xbf16>, vector<4x4x64xbf16>, vector<4x4x64xbf16>, vector<4x4x64xbf16> -> vector<4x4x256xbf16>
    %10 = vector.shape_cast %9 : vector<4x4x256xbf16> to vector<16x256xbf16>
    %c0_7 = arith.constant 0 : index
    %c0_8 = arith.constant 0 : index
    %11 = vector.load %arg4[%c0_7, %c0_8] : memref<256x128xbf16, #tpu.memory_space<vmem>>, vector<256x128xbf16>
    %cst = arith.constant dense<0.000000e+00> : vector<16x128xf32>
    %12 = tpu.matmul %10, %11, %cst {dimension_numbers = #tpu.dot_dimension_numbers<[1], [0], [0], [1], [0, 0, 1, 1], [], []>} : vector<16x256xbf16>, vector<256x128xbf16>, vector<16x128xf32> -> vector<16x128xf32>
    %c0_9 = arith.constant 0 : index
    %c0_10 = arith.constant 0 : index
    %13 = vector.load %arg5[%c0_9, %c0_10] : memref<1x128xf32, #tpu.memory_space<vmem>>, vector<1x128xf32>
    %14 = vector.broadcast %13 : vector<1x128xf32> to vector<16x128xf32>
    %15 = arith.addf %12, %14 : vector<16x128xf32>
    %cst_11 = arith.constant dense<0.000000e+00> : vector<16xf32>
    %16 = vector.multi_reduction <add>, %15, %cst_11 [1] : vector<16x128xf32> to vector<16xf32>
    %17 = vector.shape_cast %16 : vector<16xf32> to vector<16x1xf32>
    %cst_12 = arith.constant 1.280000e+02 : f32
    %18 = vector.broadcast %cst_12 : f32 to vector<16x1xf32>
    %19 = arith.divf %17, %18 : vector<16x1xf32>
    %20 = vector.broadcast %19 : vector<16x1xf32> to vector<16x128xf32>
    %21 = arith.subf %15, %20 : vector<16x128xf32>
    %22 = arith.mulf %21, %21 : vector<16x128xf32>
    %cst_13 = arith.constant dense<0.000000e+00> : vector<16xf32>
    %23 = vector.multi_reduction <add>, %22, %cst_13 [1] : vector<16x128xf32> to vector<16xf32>
    %24 = vector.shape_cast %23 : vector<16xf32> to vector<16x1xf32>
    %cst_14 = arith.constant 1.280000e+02 : f32
    %25 = vector.broadcast %cst_14 : f32 to vector<16x1xf32>
    %26 = arith.divf %24, %25 : vector<16x1xf32>
    %cst_15 = arith.constant 9.99999974E-6 : f32
    %27 = vector.broadcast %cst_15 : f32 to vector<16x1xf32>
    %28 = arith.addf %26, %27 : vector<16x1xf32>
    %29 = math.rsqrt %28 : vector<16x1xf32>
    %30 = vector.broadcast %29 : vector<16x1xf32> to vector<16x128xf32>
    %31 = arith.mulf %21, %30 : vector<16x128xf32>
    %c0_16 = arith.constant 0 : index
    %c0_17 = arith.constant 0 : index
    %32 = vector.load %arg6[%c0_16, %c0_17] : memref<1x128xf32, #tpu.memory_space<vmem>>, vector<1x128xf32>
    %33 = vector.broadcast %32 : vector<1x128xf32> to vector<16x128xf32>
    %34 = arith.mulf %31, %33 : vector<16x128xf32>
    %c0_18 = arith.constant 0 : index
    %c0_19 = arith.constant 0 : index
    %35 = vector.load %arg7[%c0_18, %c0_19] : memref<1x128xf32, #tpu.memory_space<vmem>>, vector<1x128xf32>
    %36 = vector.broadcast %35 : vector<1x128xf32> to vector<16x128xf32>
    %37 = arith.addf %34, %36 : vector<16x128xf32>
    %38 = vector.shape_cast %37 : vector<16x128xf32> to vector<1x16x128xf32>
    %c0_20 = arith.constant 0 : index
    %c0_21 = arith.constant 0 : index
    %c0_22 = arith.constant 0 : index
    %39 = vector.load %arg8[%c0_20, %c0_21, %c0_22] : memref<1x16x128xf32, #tpu.memory_space<vmem>>, vector<1x16x128xf32>
    tpu.vector_store %arg8[%c0_20, %c0_21, %c0_22], %38 {strides = array<i32>} : memref<1x16x128xf32, #tpu.memory_space<vmem>>, vector<1x16x128xf32>,
    return
  }
  func.func @transform_0(%arg0: i32, %arg1: i32) -> (i32, i32, i32, i32) {
    %c1_i32 = arith.constant 1 : i32
    %0 = arith.muli %arg0, %c1_i32 : i32
    %1 = arith.addi %0, %arg1 : i32
    %c0_i32 = arith.constant 0 : i32
    %c0_i32_0 = arith.constant 0 : i32
    %c0_i32_1 = arith.constant 0 : i32
    %c0_i32_2 = arith.constant 0 : i32
    return %1, %c0_i32, %c0_i32_0, %c0_i32_1 : i32, i32, i32, i32
  }
  func.func @transform_1(%arg0: i32, %arg1: i32) -> (i32, i32, i32, i32) {
    %c1_i32 = arith.constant 1 : i32
    %0 = arith.muli %arg0, %c1_i32 : i32
    %1 = arith.addi %0, %arg1 : i32
    %c0_i32 = arith.constant 0 : i32
    %c0_i32_0 = arith.constant 0 : i32
    %c0_i32_1 = arith.constant 0 : i32
    %c0_i32_2 = arith.constant 0 : i32
    return %1, %c0_i32, %c0_i32_0, %c0_i32_1 : i32, i32, i32, i32
  }
  func.func @transform_2(%arg0: i32, %arg1: i32) -> (i32, i32) {
    %c0_i32 = arith.constant 0 : i32
    %c0_i32_0 = arith.constant 0 : i32
    %c0_i32_1 = arith.constant 0 : i32
    return %c0_i32, %c0_i32_0 : i32, i32
  }
  func.func @transform_3(%arg0: i32, %arg1: i32) -> (i32, i32) {
    %c0_i32 = arith.constant 0 : i32
    %c0_i32_0 = arith.constant 0 : i32
    %c0_i32_1 = arith.constant 0 : i32
    return %c0_i32, %c0_i32_0 : i32, i32
  }
  func.func @transform_4(%arg0: i32, %arg1: i32) -> (i32, i32) {
    %c0_i32 = arith.constant 0 : i32
    %c0_i32_0 = arith.constant 0 : i32
    %c0_i32_1 = arith.constant 0 : i32
    return %c0_i32, %c0_i32_0 : i32, i32
  }
  func.func @transform_5(%arg0: i32, %arg1: i32) -> (i32, i32) {
    %c0_i32 = arith.constant 0 : i32
    %c0_i32_0 = arith.constant 0 : i32
    %c0_i32_1 = arith.constant 0 : i32
    return %c0_i32, %c0_i32_0 : i32, i32
  }
  func.func @transform_6(%arg0: i32, %arg1: i32) -> (i32, i32, i32) {
    %c0_i32 = arith.constant 0 : i32
    %c0_i32_0 = arith.constant 0 : i32
    return %arg0, %arg1, %c0_i32 : i32, i32, i32
  }
}

</mosaic_0001>

<llo_original>
// kernel: overlap_patch_embed.1
$region0: #{overlap_patch_embed.1}
  #allocation0 [shape = 'u32[]', space=smem, size = 0x4, offset = 0x4, fixed_abs, tag = 'smem constant byte address 0x4 - core index']
  #allocation1 [shape = 'u32[144,128]{1,0:T(1,128)}', space=vmem, size = 0x12000, scoped, tag = 'internal scratch']
  %s0 = inlined_call_operand.vmem [shape: bf16[2,4,5,64], index: 0, kind: input, shape index: {}]
  %s1 = inlined_call_operand.vmem [shape: bf16[2,1,5,64], index: 1, kind: input, shape index: {}]
  %s2 = inlined_call_operand.vmem [shape: bf16[256,128], index: 2, kind: input, shape index: {}]
  %s3 = inlined_call_operand.vmem [shape: f32[1,128], index: 3, kind: input, shape index: {}]
  %s4 = inlined_call_operand.vmem [shape: f32[1,128], index: 4, kind: input, shape index: {}]
  %s5 = inlined_call_operand.vmem [shape: f32[1,128], index: 5, kind: input, shape index: {}]
  %s6 = inlined_call_operand.hbm [shape: f32[2,16,128], index: 6, kind: output, shape index: {}]
  %s7 = sld [smem:[#allocation0]]
  $region57: #{overlap_patch_embed.1} parent=0
    _
  %s9 = ssub.s32 1, %s7
  %s10 = scalar_select 0, %s9, %s7
  $region1: #{overlap_patch_embed.1} parent=0
    #allocation2 [shape = 'u8[16384]{0}', space=vmem, size = 0x4000, scoped, tag = 'output window, operand 0']
    #allocation3 [shape = 's32[2]{0}', space=sflag, size = 0x8, scoped, tag = 'scoped memory for overlap_patch_embed.1']
    %11 = vsyncpa [#allocation3], 0
    %s12 = scalar_lea.sflag [#allocation3], 1
    %13 = vsyncpa %s12, 0
    loop: start=0, step=1, limit=4
    $region2: #{overlap_patch_embed.1} parent=1 // loop_pre_header
      _
    $region3: #{overlap_patch_embed.1} parent=1 // loop_header
      %s15 = sphi 0, %s19
      %p16 = scmp.ge.s32.totalorder %s15, 4
      %s22 = sphi 0, %s34
      %s23 = sphi 0, %s30
      %s24 = sphi 0, %s22
      %s25 = sphi 0, %s23
      %s26 = sphi 0, %s24
      %s27 = sphi 0, %s25
      %s39 = sphi 0, %s41
      %s42 = sphi 0, %s39
      %s43 = sphi 0, %s42
      %s59 = sphi 0, %s43
      %s67 = sphi 0, %s69
      %s70 = sphi 0, %s67
      %s71 = sphi 0, %s70
      %s87 = sphi 0, %s71
      %s91 = sphi 0, %s91
      %s93 = sphi 0, %s91
      %s94 = sphi 0, %s93
      %s108 = sphi 0, %s94
      %s112 = sphi 0, %s112
      %s114 = sphi 0, %s112
      %s115 = sphi 0, %s114
      %s129 = sphi 0, %s115
      %s133 = sphi 0, %s133
      %s135 = sphi 0, %s133
      %s136 = sphi 0, %s135
      %s150 = sphi 0, %s136
      %s154 = sphi 0, %s154
      %s156 = sphi 0, %s154
      %s157 = sphi 0, %s156
      %s171 = sphi 0, %s157
      %s179 = sphi 0, %s181
      %s182 = sphi 0, %s179
      %s183 = sphi 0, %s182
      %s199 = sphi 0, %s183
    $region4: #{overlap_patch_embed.1} parent=1 // loop_header_branch
      %18 = sbr.rel (%p16) target = $region8
    $region5: #{overlap_patch_embed.1} parent=1 // loop_body
      %s20 = ssub.s32 %s15, 1
      %s21 = ssub.s32 %s15, 2
      %s28 = sadd.s32 1, %s23
      %p29 = scmp.ge.s32.totalorder %s28, 1
      %s30 = scalar_select %p29, 0, %s28
      %s31 = sadd.s32 1, %s22
      %s32 = scalar_select %p29, %s31, %s22
      %p33 = scmp.ge.s32.totalorder %s32, 2
      %s34 = scalar_select %p33, 0, %s32
      %s35 = sadd.s32 %s22, %s23
      %s36 = sadd.s32 %s34, %s30
      %s37 = ssub.s32 %s35, %s36
      %p38 = scmp.eq.s32.totalorder %s37, 0
      %s40 = sadd.s32 %s39, 1
      %s41 = scalar_select %p38, %s39, %s40
      %p44 = pneg %p38
      %p45 = scmp.eq.s32.totalorder %s15, 1
      %p46 = por %p44, %p45
      %p47 = scmp.ne.s32.totalorder %s39, %s42
      %p48 = scmp.eq.s32.totalorder %s15, 0
      %p49 = por %p47, %p48
      %p50 = scmp.ne.s32.totalorder %s39, %s42
      %p51 = scmp.eq.s32.totalorder %s20, 1
      %p52 = por %p50, %p51
      %p53 = scmp.ne.s32.totalorder %s42, %s43
      %p54 = scmp.eq.s32.totalorder %s20, 0
      %p55 = por %p53, %p54
      %p56 = scmp.ne.s32.totalorder %s42, %s43
      %p57 = scmp.eq.s32.totalorder %s21, 1
      %p58 = por %p56, %p57
      %p60 = scmp.ne.s32.totalorder %s43, %s59
      %p61 = scmp.eq.s32.totalorder %s21, 0
      %p62 = por %p60, %p61
      %s63 = sadd.s32 %s22, %s23
      %s64 = sadd.s32 %s34, %s30
      %s65 = ssub.s32 %s63, %s64
      %p66 = scmp.eq.s32.totalorder %s65, 0
      %s68 = sadd.s32 %s67, 1
      %s69 = scalar_select %p66, %s67, %s68
      %p72 = pneg %p66
      %p73 = scmp.eq.s32.totalorder %s15, 1
      %p74 = por %p72, %p73
      %p75 = scmp.ne.s32.totalorder %s67, %s70
      %p76 = scmp.eq.s32.totalorder %s15, 0
      %p77 = por %p75, %p76
      %p78 = scmp.ne.s32.totalorder %s67, %s70
      %p79 = scmp.eq.s32.totalorder %s20, 1
      %p80 = por %p78, %p79
      %p81 = scmp.ne.s32.totalorder %s70, %s71
      %p82 = scmp.eq.s32.totalorder %s20, 0
      %p83 = por %p81, %p82
      %p84 = scmp.ne.s32.totalorder %s70, %s71
      %p85 = scmp.eq.s32.totalorder %s21, 1
      %p86 = por %p84, %p85
      %p88 = scmp.ne.s32.totalorder %s71, %s87
      %p89 = scmp.eq.s32.totalorder %s21, 0
      %p90 = por %p88, %p89
      %s92 = sadd.s32 %s91, 1
      %p95 = scmp.eq.s32.totalorder %s15, 1
      %p96 = scmp.ne.s32.totalorder %s91, %s93
      %p97 = scmp.eq.s32.totalorder %s15, 0
      %p98 = por %p96, %p97
      %p99 = scmp.ne.s32.totalorder %s91, %s93
      %p100 = scmp.eq.s32.totalorder %s20, 1
      %p101 = por %p99, %p100
      %p102 = scmp.ne.s32.totalorder %s93, %s94
      %p103 = scmp.eq.s32.totalorder %s20, 0
      %p104 = por %p102, %p103
      %p105 = scmp.ne.s32.totalorder %s93, %s94
      %p106 = scmp.eq.s32.totalorder %s21, 1
      %p107 = por %p105, %p106
      %p109 = scmp.ne.s32.totalorder %s94, %s108
      %p110 = scmp.eq.s32.totalorder %s21, 0
      %p111 = por %p109, %p110
      %s113 = sadd.s32 %s112, 1
      %p116 = scmp.eq.s32.totalorder %s15, 1
      %p117 = scmp.ne.s32.totalorder %s112, %s114
      %p118 = scmp.eq.s32.totalorder %s15, 0
      %p119 = por %p117, %p118
      %p120 = scmp.ne.s32.totalorder %s112, %s114
      %p121 = scmp.eq.s32.totalorder %s20, 1
      %p122 = por %p120, %p121
      %p123 = scmp.ne.s32.totalorder %s114, %s115
      %p124 = scmp.eq.s32.totalorder %s20, 0
      %p125 = por %p123, %p124
      %p126 = scmp.ne.s32.totalorder %s114, %s115
      %p127 = scmp.eq.s32.totalorder %s21, 1
      %p128 = por %p126, %p127
      %p130 = scmp.ne.s32.totalorder %s115, %s129
      %p131 = scmp.eq.s32.totalorder %s21, 0
      %p132 = por %p130, %p131
      %s134 = sadd.s32 %s133, 1
      %p137 = scmp.eq.s32.totalorder %s15, 1
      %p138 = scmp.ne.s32.totalorder %s133, %s135
      %p139 = scmp.eq.s32.totalorder %s15, 0
      %p140 = por %p138, %p139
      %p141 = scmp.ne.s32.totalorder %s133, %s135
      %p142 = scmp.eq.s32.totalorder %s20, 1
      %p143 = por %p141, %p142
      %p144 = scmp.ne.s32.totalorder %s135, %s136
      %p145 = scmp.eq.s32.totalorder %s20, 0
      %p146 = por %p144, %p145
      %p147 = scmp.ne.s32.totalorder %s135, %s136
      %p148 = scmp.eq.s32.totalorder %s21, 1
      %p149 = por %p147, %p148
      %p151 = scmp.ne.s32.totalorder %s136, %s150
      %p152 = scmp.eq.s32.totalorder %s21, 0
      %p153 = por %p151, %p152
      %s155 = sadd.s32 %s154, 1
      %p158 = scmp.eq.s32.totalorder %s15, 1
      %p159 = scmp.ne.s32.totalorder %s154, %s156
      %p160 = scmp.eq.s32.totalorder %s15, 0
      %p161 = por %p159, %p160
      %p162 = scmp.ne.s32.totalorder %s154, %s156
      %p163 = scmp.eq.s32.totalorder %s20, 1
      %p164 = por %p162, %p163
      %p165 = scmp.ne.s32.totalorder %s156, %s157
      %p166 = scmp.eq.s32.totalorder %s20, 0
      %p167 = por %p165, %p166
      %p168 = scmp.ne.s32.totalorder %s156, %s157
      %p169 = scmp.eq.s32.totalorder %s21, 1
      %p170 = por %p168, %p169
      %p172 = scmp.ne.s32.totalorder %s157, %s171
      %p173 = scmp.eq.s32.totalorder %s21, 0
      %p174 = por %p172, %p173
      %s175 = ssub.s32 %s22, %s34
      %s176 = ssub.s32 %s23, %s30
      %s177 = sor.u32 %s175, %s176
      %p178 = scmp.eq.s32.totalorder %s177, 0
      %s180 = sadd.s32 %s179, 1
      %s181 = scalar_select %p178, %s179, %s180
      %p184 = pneg %p178
      %p185 = scmp.eq.s32.totalorder %s15, 1
      %p186 = por %p184, %p185
      %p187 = scmp.ne.s32.totalorder %s179, %s182
      %p188 = scmp.eq.s32.totalorder %s15, 0
      %p189 = por %p187, %p188
      %p190 = scmp.ne.s32.totalorder %s179, %s182
      %p191 = scmp.eq.s32.totalorder %s20, 1
      %p192 = por %p190, %p191
      %p193 = scmp.ne.s32.totalorder %s182, %s183
      %p194 = scmp.eq.s32.totalorder %s20, 0
      %p195 = por %p193, %p194
      %p196 = scmp.ne.s32.totalorder %s182, %s183
      %p197 = scmp.eq.s32.totalorder %s21, 1
      %p198 = por %p196, %p197
      %p200 = scmp.ne.s32.totalorder %s183, %s199
      %p201 = scmp.eq.s32.totalorder %s21, 0
      %p202 = por %p200, %p201
      %p203 = scmp.le.s32.totalorder 1, %s15
      %p204 = scmp.lt.s32.totalorder %s15, 3
      %p205 = pnand %p203, %p204
      %p206 = pneg %p205
      // Predicated region
      $region9: #{overlap_patch_embed.1} parent=5 // pred_check
        _
      $region10: #{overlap_patch_embed.1} parent=5 // pred_check_branch
        %208 = sbr.rel (%p205) target = $region12
      $region11: #{overlap_patch_embed.1} parent=5 // pred_region
        %s209 = ssub.s32 %s15, 1
        // Predicated region
        $region13: #{overlap_patch_embed.1} parent=11 // pred_check
          %p210 = pneg %p104
        $region14: #{overlap_patch_embed.1} parent=11 // pred_check_branch
          %212 = sbr.rel (%p210) target = $region16
        $region15: #{overlap_patch_embed.1} parent=11 // pred_region
          _
        $region16: #{overlap_patch_embed.1} parent=11 // pred_fallthru
          _
        // Predicated region
        $region17: #{overlap_patch_embed.1} parent=11 // pred_check
          %p213 = pneg %p125
        $region18: #{overlap_patch_embed.1} parent=11 // pred_check_branch
          %215 = sbr.rel (%p213) target = $region20
        $region19: #{overlap_patch_embed.1} parent=11 // pred_region
          _
        $region20: #{overlap_patch_embed.1} parent=11 // pred_fallthru
          _
        // Predicated region
        $region21: #{overlap_patch_embed.1} parent=11 // pred_check
          %p216 = pneg %p146
        $region22: #{overlap_patch_embed.1} parent=11 // pred_check_branch
          %218 = sbr.rel (%p216) target = $region24
        $region23: #{overlap_patch_embed.1} parent=11 // pred_region
          _
        $region24: #{overlap_patch_embed.1} parent=11 // pred_fallthru
          _
        // Predicated region
        $region25: #{overlap_patch_embed.1} parent=11 // pred_check
          %p219 = pneg %p167
        $region26: #{overlap_patch_embed.1} parent=11 // pred_check_branch
          %221 = sbr.rel (%p219) target = $region28
        $region27: #{overlap_patch_embed.1} parent=11 // pred_region
          _
        $region28: #{overlap_patch_embed.1} parent=11 // pred_fallthru
          _
      $region12: #{overlap_patch_embed.1} parent=5 // pred_fallthru
        _
      %p222 = scmp.lt.s32.totalorder %s15, 2
      // Predicated region
      $region29: #{overlap_patch_embed.1} parent=5 // pred_check
        %p223 = pneg %p222
      $region30: #{overlap_patch_embed.1} parent=5 // pred_check_branch
        %225 = sbr.rel (%p223) target = $region32
      $region31: #{overlap_patch_embed.1} parent=5 // pred_region
        // Predicated region
        $region33: #{overlap_patch_embed.1} parent=31 // pred_check
          %p226 = pneg %p49
        $region34: #{overlap_patch_embed.1} parent=31 // pred_check_branch
          %228 = sbr.rel (%p226) target = $region36
        $region35: #{overlap_patch_embed.1} parent=31 // pred_region
          %s229 = sadd.s32 %s22, %s23
          %p230 = scmp.lt.s32.totalorder %s229, 1
          %s231 = scalar_select %p230, %s229, 1
          %s232 = smul.addr %s231, 4
          %s233 = smul.addr %s232, 4
          %s234 = scalar_lea.vmem %s0, %s233
          %s235 = sadd.s32 %s22, %s23
        $region36: #{overlap_patch_embed.1} parent=31 // pred_fallthru
          _
        // Predicated region
        $region37: #{overlap_patch_embed.1} parent=31 // pred_check
          %p236 = pneg %p77
        $region38: #{overlap_patch_embed.1} parent=31 // pred_check_branch
          %238 = sbr.rel (%p236) target = $region40
        $region39: #{overlap_patch_embed.1} parent=31 // pred_region
          %s239 = sadd.s32 %s22, %s23
          %p240 = scmp.lt.s32.totalorder %s239, 1
          %s241 = scalar_select %p240, %s239, 1
          %s242 = smul.addr %s241, 4
          %s243 = scalar_lea.vmem %s1, %s242
          %s244 = sadd.s32 %s22, %s23
        $region40: #{overlap_patch_embed.1} parent=31 // pred_fallthru
          _
      $region32: #{overlap_patch_embed.1} parent=5 // pred_fallthru
        _
      %p245 = scmp.le.s32.totalorder 1, %s15
      %p246 = scmp.lt.s32.totalorder %s15, 3
      %p247 = pnand %p245, %p246
      %p248 = pneg %p247
      // Predicated region
      $region41: #{overlap_patch_embed.1} parent=5 // pred_check
        _
      $region42: #{overlap_patch_embed.1} parent=5 // pred_check_branch
        %250 = sbr.rel (%p247) target = $region44
      $region43: #{overlap_patch_embed.1} parent=5 // pred_region
        %s251 = ssub.s32 %s15, 1
        %s252 = sadd.s32 %s24, %s25
        %p253 = scmp.lt.s32.totalorder %s252, 1
        %s254 = scalar_select %p253, %s252, 1
        %s255 = smul.addr %s254, 4
        %s256 = smul.addr %s255, 4
        %s257 = scalar_lea.vmem %s0, %s256
        %p258 = pneg %p55
        %p259 = pneg %p52
        %s260 = sadd.s32 %s24, %s25
        %p261 = scmp.lt.s32.totalorder %s260, 1
        %s262 = scalar_select %p261, %s260, 1
        %s263 = smul.addr %s262, 4
        %s264 = scalar_lea.vmem %s1, %s263
        %p265 = pneg %p83
        %p266 = pneg %p80
        %p267 = pneg %p104
        %p268 = pneg %p101
        %p269 = pneg %p125
        %p270 = pneg %p122
        %p271 = pneg %p146
        %p272 = pneg %p143
        %p273 = pneg %p167
        %p274 = pneg %p164
        %p275 = pneg %p195
        %p276 = pneg %p192
        %s277 = sand.u32 %s182, 1
        %s278 = scalar_lea.sflag [#allocation3], %s277
        %s279 = sand.u32 %s182, 1
        %s280 = smul.addr %s279, 16
        %s281 = scalar_lea.vmem [#allocation2], %s280
        %s282 = sadd.s32 %s24, %s25
        %p283 = scmp.lt.s32.totalorder %s282, 1
        %s284 = scalar_select %p283, %s282, 1
        %s285 = smul.addr %s284, 4
        %s286 = smul.addr %s285, 4
        %s287 = scalar_lea.vmem %s0, %s286
        %s288 = sadd.s32 %s24, %s25
        %s289 = sadd.s32 %s24, %s25
        %p290 = scmp.lt.s32.totalorder %s289, 1
        %s291 = scalar_select %p290, %s289, 1
        %s292 = smul.addr %s291, 4
        %s293 = scalar_lea.vmem %s1, %s292
        %s294 = sadd.s32 %s24, %s25
        %s295 = smul.u32 2, %s25
        %v297 = vld [vmem:[%s287] sm:$0x7]
        %v298 = vld [vmem:[%s287 + $0x4] sm:$0x7]
        %v299 = vld [vmem:[%s287 + $0x8] sm:$0x7]
        %v300 = vld [vmem:[%s287 + $0xc] sm:$0x7]
        %v301 = vld [vmem:[%s293] sm:$0x7]
        %v306 = vunpack.c.l.b16 %v297
        %v307 = vunpack.c.l.b16 %v298
        %v308 = vunpack.c.l.b16 %v299
        %v309 = vunpack.c.l.b16 %v300
        %v310 = vpack.c.b16 %v306, %v306
        %v311 = vpack.c.b16 %v307, %v307
        %v312 = vpack.c.b16 %v308, %v308
        %v313 = vpack.c.b16 %v309, %v309
        %v315 = vshrl.u32 %v310, 16
        %v317 = vshll.u32 %v310, 16
        %v319 = vrot.slane %v317, 1
        %v320 = vor.u32 %v315, %v319
        %v322 = vshrl.u32 %v311, 16
        %v324 = vshll.u32 %v311, 16
        %v326 = vrot.slane %v324, 1
        %v327 = vor.u32 %v322, %v326
        %v329 = vshrl.u32 %v312, 16
        %v331 = vshll.u32 %v312, 16
        %v333 = vrot.slane %v331, 1
        %v334 = vor.u32 %v329, %v333
        %v336 = vshrl.u32 %v313, 16
        %v338 = vshll.u32 %v313, 16
        %v340 = vrot.slane %v338, 1
        %v341 = vor.u32 %v336, %v340
        %342 = vrot.lane.b32.xlu0 %v320, 64
        %v343 = vpop.permute.xlu0 %342
        %344 = vrot.lane.b32.xlu0 %v327, 64
        %v345 = vpop.permute.xlu0 %344
        %346 = vrot.lane.b32.xlu0 %v334, 64
        %v347 = vpop.permute.xlu0 %346
        %348 = vrot.lane.b32.xlu0 %v341, 64
        %v349 = vpop.permute.xlu0 %348
        %v351 = vunpack.c.l.b16 %v301
        %v352 = vpack.c.b16 %v351, %v351
        %v354 = vshrl.u32 %v352, 16
        %v356 = vshll.u32 %v352, 16
        %v358 = vrot.slane %v356, 1
        %v359 = vor.u32 %v354, %v358
        %360 = vrot.lane.b32.xlu0 %v359, 64
        %v361 = vpop.permute.xlu0 %360
        %vm362 = vcmask 523264
        %v365 = vsel %vm362, %v297, %v343
        %v368 = vsel %vm362, %v298, %v345
        %v371 = vsel %vm362, %v299, %v347
        %v374 = vsel %vm362, %v300, %v349
        %v377 = vsel %vm362, %v301, %v361
        %v383 = vcombine.low %v365, %v368
        %v385 = vunpack.c.l.s4 1983009808
        %v386 = vunpack.c.0.s8 %v385
        %v387 = vlaneseq
        %v388 = vshrl.u32 %v387, 7
        %v389 = vsub.s32 %v386, %v388
        %v390 = vrot.slane %v383, %v389
        %v391 = vcombine.low %v368, %v371
        %v393 = vunpack.c.l.s4 1983009808
        %v394 = vunpack.c.0.s8 %v393
        %v395 = vlaneseq
        %v396 = vshrl.u32 %v395, 7
        %v397 = vsub.s32 %v394, %v396
        %v398 = vrot.slane %v391, %v397
        %v399 = vcombine.low %v371, %v374
        %v401 = vunpack.c.l.s4 1983009808
        %v402 = vunpack.c.0.s8 %v401
        %v403 = vlaneseq
        %v404 = vshrl.u32 %v403, 7
        %v405 = vsub.s32 %v402, %v404
        %v406 = vrot.slane %v399, %v405
        %v407 = vcombine.low %v374, %v377
        %v409 = vunpack.c.l.s4 1983009808
        %v410 = vunpack.c.0.s8 %v409
        %v411 = vlaneseq
        %v412 = vshrl.u32 %v411, 7
        %v413 = vsub.s32 %v410, %v412
        %v414 = vrot.slane %v407, %v413
        %v415 = vld [vmem:[%s2] sm:$0xf]
        %v416 = vld [vmem:[%s2 + $0x4] sm:$0xf]
        %v417 = vld [vmem:[%s2 + $0x8] sm:$0xf]
        %v418 = vld [vmem:[%s2 + $0xc] sm:$0xf]
        %v419 = vld [vmem:[%s2 + $0x10] sm:$0xf]
        %v420 = vld [vmem:[%s2 + $0x14] sm:$0xf]
        %v421 = vld [vmem:[%s2 + $0x18] sm:$0xf]
        %v422 = vld [vmem:[%s2 + $0x1c] sm:$0xf]
        %v423 = vld [vmem:[%s2 + $0x20] sm:$0xf]
        %v424 = vld [vmem:[%s2 + $0x24] sm:$0xf]
        %v425 = vld [vmem:[%s2 + $0x28] sm:$0xf]
        %v426 = vld [vmem:[%s2 + $0x2c] sm:$0xf]
        %v427 = vld [vmem:[%s2 + $0x30] sm:$0xf]
        %v428 = vld [vmem:[%s2 + $0x34] sm:$0xf]
        %v429 = vld [vmem:[%s2 + $0x38] sm:$0xf]
        %v430 = vld [vmem:[%s2 + $0x3c] sm:$0xf]
        %v431 = vld [vmem:[%s2 + $0x40] sm:$0xf]
        %v432 = vld [vmem:[%s2 + $0x44] sm:$0xf]
        %v433 = vld [vmem:[%s2 + $0x48] sm:$0xf]
        %v434 = vld [vmem:[%s2 + $0x4c] sm:$0xf]
        %v435 = vld [vmem:[%s2 + $0x50] sm:$0xf]
        %v436 = vld [vmem:[%s2 + $0x54] sm:$0xf]
        %v437 = vld [vmem:[%s2 + $0x58] sm:$0xf]
        %v438 = vld [vmem:[%s2 + $0x5c] sm:$0xf]
        %v439 = vld [vmem:[%s2 + $0x60] sm:$0xf]
        %v440 = vld [vmem:[%s2 + $0x64] sm:$0xf]
        %v441 = vld [vmem:[%s2 + $0x68] sm:$0xf]
        %v442 = vld [vmem:[%s2 + $0x6c] sm:$0xf]
        %v443 = vld [vmem:[%s2 + $0x70] sm:$0xf]
        %v444 = vld [vmem:[%s2 + $0x74] sm:$0xf]
        %v445 = vld [vmem:[%s2 + $0x78] sm:$0xf]
        %v446 = vld [vmem:[%s2 + $0x7c] sm:$0xf]
        %v447 = vld [vmem:[%s3] sm:$0x1]
        %v449 = vlaneseq
        %v450 = vshrl.u32 %v449, 7
        %v451 = vsub.s32 0, %v450
        %v452 = vrot.slane %v447, %v451
        %v454 = vcombine.low %v390, %v398
        %v455 = vcombine.low %v406, %v414
        %v457 = vunpack.c.l.s4 1983009808
        %v458 = vunpack.c.0.s8 %v457
        %v459 = vlaneseq
        %v460 = vshrl.u32 %v459, 7
        %v461 = vsub.s32 %v458, %v460
        %v462 = vrot.slane %v454, %v461
        %v464 = vunpack.c.l.s4 1983009808
        %v465 = vunpack.c.0.s8 %v464
        %v466 = vlaneseq
        %v467 = vshrl.u32 %v466, 7
        %v468 = vsub.s32 %v465, %v467
        %v469 = vrot.slane %v455, %v468
        %v470 = vcombine.low %v462, %v469
        %v471 = vcombine.high %v462, %v469
        %v506 = vunpack.c.l.b16 %v415
        %v507 = vunpack.c.l.b16 %v416
        %v508 = vunpack.c.l.b16 %v417
        %v509 = vunpack.c.l.b16 %v418
        %v510 = vunpack.c.l.b16 %v419
        %v511 = vunpack.c.l.b16 %v420
        %v512 = vunpack.c.l.b16 %v421
        %v513 = vunpack.c.l.b16 %v422
        %v514 = vunpack.c.l.b16 %v423
        %v515 = vunpack.c.l.b16 %v424
        %v516 = vunpack.c.l.b16 %v425
        %v517 = vunpack.c.l.b16 %v426
        %v518 = vunpack.c.l.b16 %v427
        %v519 = vunpack.c.l.b16 %v428
        %v520 = vunpack.c.l.b16 %v429
        %v521 = vunpack.c.l.b16 %v430
        %v522 = vunpack.c.l.b16 %v431
        %v523 = vunpack.c.l.b16 %v432
        %v524 = vunpack.c.l.b16 %v433
        %v525 = vunpack.c.l.b16 %v434
        %v526 = vunpack.c.l.b16 %v435
        %v527 = vunpack.c.l.b16 %v436
        %v528 = vunpack.c.l.b16 %v437
        %v529 = vunpack.c.l.b16 %v438
        %v530 = vunpack.c.l.b16 %v439
        %v531 = vunpack.c.l.b16 %v440
        %v532 = vunpack.c.l.b16 %v441
        %v533 = vunpack.c.l.b16 %v442
        %v534 = vunpack.c.l.b16 %v443
        %v535 = vunpack.c.l.b16 %v444
        %v536 = vunpack.c.l.b16 %v445
        %v537 = vunpack.c.l.b16 %v446
        %v538 = vpack.c.b16 %v507, %v506
        %v539 = vpack.c.b16 %v509, %v508
        %v540 = vpack.c.b16 %v511, %v510
        %v541 = vpack.c.b16 %v513, %v512
        %v542 = vpack.c.b16 %v515, %v514
        %v543 = vpack.c.b16 %v517, %v516
        %v544 = vpack.c.b16 %v519, %v518
        %v545 = vpack.c.b16 %v521, %v520
        %v546 = vpack.c.b16 %v523, %v522
        %v547 = vpack.c.b16 %v525, %v524
        %v548 = vpack.c.b16 %v527, %v526
        %v549 = vpack.c.b16 %v529, %v528
        %v550 = vpack.c.b16 %v531, %v530
        %v551 = vpack.c.b16 %v533, %v532
        %v552 = vpack.c.b16 %v535, %v534
        %v553 = vpack.c.b16 %v537, %v536
        %570 = vmatprep.subr.bf16.mxu0 0
        %571 = vmatpush1.bf16.msra.mxu0 %v538
        %572 = vmatprep.subr.bf16.mxu0 0
        %573 = vmatpush1.bf16.msra.mxu0 %v539
        %574 = vmatprep.subr.bf16.mxu0 0
        %575 = vmatpush1.bf16.msra.mxu0 %v540
        %576 = vmatprep.subr.bf16.mxu0 0
        %577 = vmatpush1.bf16.msra.mxu0 %v541
        %578 = vmatprep.subr.bf16.mxu0 0
        %579 = vmatpush1.bf16.msra.mxu0 %v542
        %580 = vmatprep.subr.bf16.mxu0 0
        %581 = vmatpush1.bf16.msra.mxu0 %v543
        %582 = vmatprep.subr.bf16.mxu0 0
        %583 = vmatpush1.bf16.msra.mxu0 %v544
        %584 = vmatprep.subr.bf16.mxu0 0
        %585 = vmatpush1.bf16.msra.mxu0 %v545
        %586 = vmatprep.subr.bf16.mxu0 0
        %587 = vmatpush1.bf16.msra.mxu0 %v546
        %588 = vmatprep.subr.bf16.mxu0 0
        %589 = vmatpush1.bf16.msra.mxu0 %v547
        %590 = vmatprep.subr.bf16.mxu0 0
        %591 = vmatpush1.bf16.msra.mxu0 %v548
        %592 = vmatprep.subr.bf16.mxu0 0
        %593 = vmatpush1.bf16.msra.mxu0 %v549
        %594 = vmatprep.subr.bf16.mxu0 0
        %595 = vmatpush1.bf16.msra.mxu0 %v550
        %596 = vmatprep.subr.bf16.mxu0 0
        %597 = vmatpush1.bf16.msra.mxu0 %v551
        %598 = vmatprep.subr.bf16.mxu0 0
        %599 = vmatpush1.bf16.msra.mxu0 %v552
        %600 = vmatprep.subr.bf16.mxu0 0
        %601 = vmatpush1.bf16.msra.mxu0 %v553
        %602 = vmatprep.mubr.bf16.mxu0 %v471
        %603 = vmatmul.mubr.bf16.gmra.mrb[0].mxu0 %v470
        %v604 = vpop.f32.mrb[0].mxu0
        %v605 = vadd.f32 %v452, %v604
        %v606 = vpop.f32.mrb[0].mxu0
        %v607 = vpop.f32.mrb[0].mxu0
        %v608 = vadd.f32 %v452, %v607
        %v609 = vpop.f32.mrb[0].mxu0
        %610 = vdwg.mxu0
        %611 = vadd.xlane.f32.xlu0 %v605
        %v612 = vpop.xlane.xlu0 %611
        %613 = vadd.xlane.f32.xlu0 %v608
        %v614 = vpop.xlane.xlu0 %613
        %v615 = vrcp.pop 128.0
        %v616 = vmul.f32 %v612, %v615
        %v617 = vmul.f32 %v614, %v615
        %v618 = vsub.f32 %v605, %v616
        %v619 = vsub.f32 %v608, %v617
        %v620 = vmul.f32 %v618, %v618
        %v621 = vmul.f32 %v619, %v619
        %622 = vadd.xlane.f32.xlu0 %v620
        %v623 = vpop.xlane.xlu0 %622
        %624 = vadd.xlane.f32.xlu0 %v621
        %v625 = vpop.xlane.xlu0 %624
        %v626 = vmul.f32 %v623, %v615
        %v627 = vmul.f32 %v625, %v615
        %v628 = vadd.f32 %v626, 1e-05
        %v629 = vadd.f32 %v627, 1e-05
        %v630 = vrsqrt.pop %v628
        %v631 = vrsqrt.pop %v629
        %v632 = vmul.f32 %v618, %v630
        %v633 = vmul.f32 %v619, %v631
        %v634 = vld [vmem:[%s4] sm:$0x1]
        %v636 = vlaneseq
        %v637 = vshrl.u32 %v636, 7
        %v638 = vsub.s32 0, %v637
        %v639 = vrot.slane %v634, %v638
        %v641 = vmul.f32 %v632, %v639
        %v642 = vmul.f32 %v633, %v639
        %v643 = vld [vmem:[%s5] sm:$0x1]
        %v645 = vlaneseq
        %v646 = vshrl.u32 %v645, 7
        %v647 = vsub.s32 0, %v646
        %v648 = vrot.slane %v643, %v647
        %v650 = vadd.f32 %v641, %v648
        %v651 = vadd.f32 %v642, %v648
        %652 = vst [vmem:[%s281] sm:$0xff] %v650
        %653 = vst [vmem:[%s281 + $0x8] sm:$0xff] %v651
        %s654 = sand.u32 %s182, 1
        %s655 = scalar_lea.sflag [#allocation3], %s654
        %s656 = sand.u32 %s182, 1
        %s657 = smul.addr %s656, 16
        %s658 = scalar_lea.vmem [#allocation2], %s657
        // Predicated region
        $region45: #{overlap_patch_embed.1} parent=43 // pred_check
          %p659 = pneg %p192
        $region46: #{overlap_patch_embed.1} parent=43 // pred_check_branch
          %661 = sbr.rel (%p659) target = $region48
        $region47: #{overlap_patch_embed.1} parent=43 // pred_region
          %s662 = smul.u32 2, %s25
          %s664 = ssub.s32 256, 256
          %665 = vsyncadd %s655, %s664
          %s666 = smul.addr %s24, 2
          %s667 = sadd.s32 %s662, %s666
          %s668 = smul.addr %s667, 128
          %s669 = scalar_lea.hbm %s6, %s668
          %s670 = sshll.u32 %s658, 4
          %s671 = int_to_ptr.vmem [resolvable:$true] %s670
          %676 = dma.vmem_to_hbm [thread:$0]  %s671, 256, %s669, %s655, 128, 128, 8
        $region48: #{overlap_patch_embed.1} parent=43 // pred_fallthru
          _
      $region44: #{overlap_patch_embed.1} parent=5 // pred_fallthru
        _
      %p677 = scmp.le.s32.totalorder 2, %s15
      // Predicated region
      $region49: #{overlap_patch_embed.1} parent=5 // pred_check
        %p678 = pneg %p677
      $region50: #{overlap_patch_embed.1} parent=5 // pred_check_branch
        %680 = sbr.rel (%p678) target = $region52
      $region51: #{overlap_patch_embed.1} parent=5 // pred_region
        %s681 = ssub.s32 %s15, 2
        // Predicated region
        $region53: #{overlap_patch_embed.1} parent=51 // pred_check
          %p682 = pneg %p198
        $region54: #{overlap_patch_embed.1} parent=51 // pred_check_branch
          %684 = sbr.rel (%p682) target = $region56
        $region55: #{overlap_patch_embed.1} parent=51 // pred_region
          %s685 = sand.u32 %s183, 1
          %s686 = scalar_lea.sflag [#allocation3], %s685
          %s687 = sand.u32 %s183, 1
          %s688 = smul.addr %s687, 16
          %s689 = scalar_lea.vmem [#allocation2], %s688
          %690 = dma.done %s686, 256
        $region56: #{overlap_patch_embed.1} parent=51 // pred_fallthru
          _
      $region52: #{overlap_patch_embed.1} parent=5 // pred_fallthru
        _
    $region6: #{overlap_patch_embed.1} parent=1 // loop_footer
      %s19 = sadd.s32 1, %s15
    $region7: #{overlap_patch_embed.1} parent=1 // loop_footer_branch
      %14 = sbr.rel target = $region3
    $region8: #{overlap_patch_embed.1} parent=1 // loop_exit
      _
    %691 = vsyncpa [#allocation3], 1
    %s692 = scalar_lea.sflag [#allocation3], 1
    %693 = vsyncpa %s692, 1

</llo_original>
